<compile_context>
chip_gen: v7x
topology: tpu7x:2x2x1
jax: 0.10.0
libtpu: 0.0.40
codegen_flags: <defaults>
</compile_context>

<pallas_src>
import jax
import jax.numpy as jnp
from jax.experimental import pallas as pl
from jax.experimental.pallas import tpu as pltpu

_LANE = 128
# Per-block VMEM budget. With double-buffered input + output (~4x a block
# live) this stays within the 32 MiB scoped default on v5e/v6e/v7x.
_BLOCK_BYTES_BUDGET = 8 * 1024 * 1024


def _copy_kernel(src_ref, o_ref):
    # Pure DMA-style block copy (no compute).
    o_ref[...] = src_ref[...]


def _sublane_min(dtype) -> int:
    # Native sublane granularity: 8 rows for 32-bit, 16 for 16-bit, 32 for 8-bit.
    return max(8, 32 // jnp.dtype(dtype).itemsize)


def _prefix_copy_2d(src, out_rows, out_cols, tile_rows):
    """Copy rows [0, out_rows) x all cols of `src` via Pallas, tiled on rows."""
    grid = (pl.cdiv(out_rows, tile_rows),)
    return pl.pallas_call(
        _copy_kernel,
        out_shape=jax.ShapeDtypeStruct((out_rows, out_cols), src.dtype),
        grid_spec=pltpu.PrefetchScalarGridSpec(
            num_scalar_prefetch=0,
            grid=grid,
            in_specs=[pl.BlockSpec((tile_rows, out_cols), lambda i: (i, 0))],
            out_specs=pl.BlockSpec((tile_rows, out_cols), lambda i: (i, 0)),
        ),
        compiler_params=pltpu.CompilerParams(
            # No-op on 1-TC chips / grid=(1,), shards rows across TCs on v7x.
            dimension_semantics=("parallel",),
        ),
    )(src)


def positional_embedding_forward(pos_emb, x):
    """
    pos_emb : (1, max_seq_len, hidden_dim)  -- parameter
    x       : (batch, seq_len, hidden_dim)  -- only seq_len is used
    returns : (1, seq_len, hidden_dim)      -- same as the PyTorch forward
    """
    _, max_seq_len, hidden = pos_emb.shape
    seq_len = x.shape[1]
    assert seq_len <= max_seq_len

    dtype = pos_emb.dtype
    itemsize = jnp.dtype(dtype).itemsize
    sub = _sublane_min(dtype)

    total_in = max_seq_len * hidden
    total_out = seq_len * hidden

    # ---- Path 1: lane-dense fold (preferred) --------------------------------
    # Fold the whole table to (rows, 128); the requested slice is exactly the
    # first rows_out rows.  Big blocks, unmasked 128-lane stores.
    if total_in % _LANE == 0 and total_out % _LANE == 0:
        rows_in = total_in // _LANE
        rows_out = total_out // _LANE
        if rows_out % sub == 0 or rows_out == rows_in:
            budget_rows = max(
                sub, (_BLOCK_BYTES_BUDGET // (_LANE * itemsize)) // sub * sub
            )
            tile_rows = rows_out if rows_out <= budget_rows else budget_rows
            src = pos_emb.reshape(rows_in, _LANE)
            out = _prefix_copy_2d(src, rows_out, _LANE, tile_rows)
            return out.reshape(1, seq_len, hidden)

    # ---- Path 2: (seq, hidden) copy ------------------------------------------
    # Used when the prefix cannot be folded into full 128-lane rows.  Last dim
    # equals the full array dim (legal for any hidden); still one block for
    # typical sizes.
    if seq_len % sub == 0 or seq_len == max_seq_len:
        row_bytes = hidden * itemsize
        budget_rows = max(sub, (_BLOCK_BYTES_BUDGET // row_bytes) // sub * sub)
        tile_rows = seq_len if seq_len <= budget_rows else budget_rows
        pe2d = pos_emb.reshape(max_seq_len, hidden)
        out2d = _prefix_copy_2d(pe2d, seq_len, hidden, tile_rows)
        return out2d.reshape(1, seq_len, hidden)

    # ---- Path 3: awkward shapes ----------------------------------------------
    # A standalone contiguous-prefix slice is a single XLA DMA; a Pallas copy
    # cannot beat it, so just slice.
    # TODO(synk): fuse the broadcast-add (x + pos_emb) into a Pallas kernel --
    # that is where a custom kernel actually saves HBM traffic.
    return pos_emb[:, :seq_len, :]


if __name__ == "__main__":
    key = jax.random.PRNGKey(0)
    k_pe, k_x, k_pe2, k_x2 = jax.random.split(key, 4)

    # Small config consistent with the module: max_seq_len=16, hidden_dim=32.
    max_seq_len, hidden_dim, batch, seq_len = 16, 32, 2, 8
    pos_emb = jax.random.normal(k_pe, (1, max_seq_len, hidden_dim), dtype=jnp.float32)
    x = jax.random.normal(k_x, (batch, seq_len, hidden_dim), dtype=jnp.float32)

    out = positional_embedding_forward(pos_emb, x)
    out = jax.block_until_ready(out)
    ref = pos_emb[:, :seq_len, :]
    assert out.shape == (1, seq_len, hidden_dim)
    assert out.dtype == pos_emb.dtype
    assert jnp.array_equal(out, ref)

    # Second (moderate) config to exercise the lane-dense single-block path
    # with a sub-32-bit dtype.
    msl2, hid2, sl2 = 256, 256, 128
    pos_emb2 = jax.random.normal(k_pe2, (1, msl2, hid2), dtype=jnp.bfloat16)
    x2 = jax.random.normal(k_x2, (batch, sl2, hid2), dtype=jnp.bfloat16)

    out2 = positional_embedding_forward(pos_emb2, x2)
    out2 = jax.block_until_ready(out2)
    ref2 = pos_emb2[:, :sl2, :]
    assert out2.shape == (1, sl2, hid2)
    assert out2.dtype == pos_emb2.dtype
    assert jnp.array_equal(out2, ref2)

    print("KERNEL_OK")
</pallas_src>

<mosaic_0001>
module attributes {stable_mosaic.version = 11 : i64} {
  func.func @_copy_kernel(%arg0: i32, %arg1: memref<8x32xf32, #tpu.memory_space<vmem>>, %arg2: memref<8x32xf32, #tpu.memory_space<vmem>>) attributes {dimension_semantics = [#tpu.dimension_semantics<parallel>], iteration_bounds = array<i64: 1>, scalar_prefetch = 0 : i64, scratch_operands = 0 : i64, tpu.core_type = #tpu.core_type<tc>, window_params = [{transform_indices = @transform_0, window_bounds = array<i64: 8, 32>}, {transform_indices = @transform_1, window_bounds = array<i64: 8, 32>}]} {
    %c0 = arith.constant 0 : index
    %c0_0 = arith.constant 0 : index
    %0 = vector.load %arg1[%c0, %c0_0] : memref<8x32xf32, #tpu.memory_space<vmem>>, vector<8x32xf32>
    %c0_1 = arith.constant 0 : index
    %c0_2 = arith.constant 0 : index
    %1 = vector.load %arg2[%c0_1, %c0_2] : memref<8x32xf32, #tpu.memory_space<vmem>>, vector<8x32xf32>
    tpu.vector_store %arg2[%c0_1, %c0_2], %0 {strides = array<i32>} : memref<8x32xf32, #tpu.memory_space<vmem>>, vector<8x32xf32>,
    return
  }
  func.func @transform_0(%arg0: i32) -> (i32, i32) {
    %c0_i32 = arith.constant 0 : i32
    %c0_i32_0 = arith.constant 0 : i32
    return %arg0, %c0_i32 : i32, i32
  }
  func.func @transform_1(%arg0: i32) -> (i32, i32) {
    %c0_i32 = arith.constant 0 : i32
    %c0_i32_0 = arith.constant 0 : i32
    return %arg0, %c0_i32 : i32, i32
  }
}

</mosaic_0001>

<llo_original>
// kernel: tpu_custom_call.1
$region0: #{tpu_custom_call.1}
  #allocation0 [shape = 'u32[]', space=smem, size = 0x4, offset = 0x4, fixed_abs, tag = 'smem constant byte address 0x4 - core index']
  #allocation1 [shape = 'u32[144,128]{1,0:T(1,128)}', space=vmem, size = 0x12000, scoped, tag = 'internal scratch']
  %s0 = inlined_call_operand.hbm [shape: f32[16,32], index: 0, kind: input, shape index: {}]
  %s1 = inlined_call_operand.hbm [shape: f32[8,32], index: 1, kind: output, shape index: {}]
  %s2 = sld [smem:[#allocation0]]
  $region18: #{tpu_custom_call.1} parent=0
    _
  %s4 = ssub.s32 1, %s2
  %s5 = scalar_select 0, %s4, %s2
  $region1: #{tpu_custom_call.1} parent=0
    #allocation2 [shape = 'u8[4096]{0}', space=vmem, size = 0x1000, scoped, tag = 'input window, operand 0, single buffered']
    #allocation3 [shape = 's32[1]{0}', space=sflag, size = 0x4, scoped, tag = 'scoped memory for tpu_custom_call.1']
    #allocation4 [shape = 's32[1]{0}', space=sflag, size = 0x4, scoped, tag = 'scoped memory for tpu_custom_call.1']
    #allocation5 [shape = 'u8[4096]{0}', space=vmem, size = 0x1000, scoped, tag = 'output window, operand 0, single buffered']
    %6 = vsyncpa [#allocation3], 0
    %7 = vsyncpa [#allocation4], 0
    // Predicated region
    $region2: #{tpu_custom_call.1} parent=1 // pred_check
      _
    $region3: #{tpu_custom_call.1} parent=1 // pred_check_branch
      %9 = sbr.rel (0) target = $region5
    $region4: #{tpu_custom_call.1} parent=1 // pred_region
      %s11 = ssub.s32 128, 128
      %12 = vsyncadd [#allocation3], %s11
      %s14 = sshll.u32 [#allocation2], 4
      %s15 = int_to_ptr.vmem [resolvable:$true] %s14
      %17 = dma.hbm_to_vmem [thread:$0]  %s0, 128, %s15, [#allocation3]
    $region5: #{tpu_custom_call.1} parent=1 // pred_fallthru
      _
    // Predicated region
    $region6: #{tpu_custom_call.1} parent=1 // pred_check
      _
    $region7: #{tpu_custom_call.1} parent=1 // pred_check_branch
      %19 = sbr.rel (0) target = $region9
    $region8: #{tpu_custom_call.1} parent=1 // pred_region
      %20 = dma.done [#allocation3], 128
    $region9: #{tpu_custom_call.1} parent=1 // pred_fallthru
      _
    %v21 = vld [vmem:[#allocation2] sm:$0xff]
    %vm22 = vcmask 261120
    %23 = vst.msk [vmem:[#allocation5] sm:$0xff] %vm22, %v21
    // Predicated region
    $region10: #{tpu_custom_call.1} parent=1 // pred_check
      _
    $region11: #{tpu_custom_call.1} parent=1 // pred_check_branch
      %25 = sbr.rel (0) target = $region13
    $region12: #{tpu_custom_call.1} parent=1 // pred_region
      %s27 = ssub.s32 128, 128
      %28 = vsyncadd [#allocation4], %s27
      %s30 = sshll.u32 [#allocation5], 4
      %s31 = int_to_ptr.vmem [resolvable:$true] %s30
      %33 = dma.vmem_to_hbm [thread:$0]  %s31, 128, %s1, [#allocation4]
    $region13: #{tpu_custom_call.1} parent=1 // pred_fallthru
      _
    // Predicated region
    $region14: #{tpu_custom_call.1} parent=1 // pred_check
      _
    $region15: #{tpu_custom_call.1} parent=1 // pred_check_branch
      %35 = sbr.rel (0) target = $region17
    $region16: #{tpu_custom_call.1} parent=1 // pred_region
      %36 = dma.done [#allocation4], 128
    $region17: #{tpu_custom_call.1} parent=1 // pred_fallthru
      _
    %37 = vsyncpa [#allocation3], 1
    %38 = vsyncpa [#allocation4], 1

</llo_original>
